<compile_context>
chip_gen: v5e
topology: v5e:2x2
jax: 0.10.0
libtpu: 0.0.40
codegen_flags: <defaults>
</compile_context>

<pallas_src>
import functools

import jax
import jax.numpy as jnp
from jax.experimental import pallas as pl
from jax.experimental.pallas import tpu as pltpu


# ----------------------------- hardware queries ------------------------------

def _round_up(x, m):
    return ((x + m - 1) // m) * m


@functools.lru_cache(maxsize=None)
def _vmem_budget_bytes():
    """Scoped-VMEM budget: ~half of physical VMEM, clamped to [32, 96] MiB."""
    cap = None
    try:
        cap = getattr(pltpu.get_tpu_info(), "vmem_capacity_bytes", None)
    except Exception:
        cap = None
    if not cap:
        cap = 64 * 1024 * 1024  # assume the smallest generation (v7x) if unknown
    return int(min(96 * 1024 * 1024, max(32 * 1024 * 1024, cap // 2)))


@functools.lru_cache(maxsize=None)
def _tpu_generation():
    try:
        kind = jax.devices()[0].device_kind.lower()
    except Exception:
        return 6
    for gen in (7, 6, 5, 4, 3, 2):
        if "v{}".format(gen) in kind:
            return gen
    return 6


# ----------------------------- Pallas kernels ------------------------------

def _linear_kernel(x_ref, w_ref, b_ref, o_ref):
    # grid = (M/tm, N/tn, K/tk).  The f32 output block's index_map ignores k,
    # so it stays resident across the K ("arbitrary") axis: accumulate into it
    # directly (no separate VMEM scratch), add the bias on the last K step.
    @pl.when(pl.program_id(2) == 0)
    def _():
        o_ref[...] = jnp.zeros_like(o_ref)

    o_ref[...] += jnp.dot(
        x_ref[...], w_ref[...], preferred_element_type=jnp.float32
    )

    @pl.when(pl.program_id(2) == pl.num_programs(2) - 1)
    def _():
        o_ref[...] += b_ref[...]


def _make_allreduce_avg_kernel(world_size):
    """Kernel closure: sums `world_size` (tile_rows, 128) blocks in f32 and
    scales by 1/world_size (static Python constant, no SMEM operand); writes
    back in the output ref's dtype."""
    inv_ws = 1.0 / float(world_size)

    def kernel(*refs):
        g_refs, o_ref = refs[:-1], refs[-1]
        acc = g_refs[0][...].astype(jnp.float32)
        for r in g_refs[1:]:
            acc = acc + r[...].astype(jnp.float32)
        o_ref[...] = (acc * inv_ws).astype(o_ref.dtype)

    return kernel


# ------------------------------- linear wrapper ------------------------------

def _choose_tile(dim, pref, align):
    """Largest multiple-of-`align` divisor of `dim` that is <= pref; the full
    dim when it is already small; `pref` otherwise (caller pads the dim)."""
    pref = max(pref, align)
    if dim <= pref:
        return dim  # full-array-dim block is always legal
    t = (pref // align) * align
    while t >= align:
        if dim % t == 0:
            return t
        t -= align
    return pref  # no aligned divisor: caller pads dim up to a multiple of pref


def pallas_linear(x, w, b):
    """y = x @ w + b.  x: (B, I), w: (I, O), b: (O,).  bf16 MXU inputs, f32 acc."""
    B, I = x.shape
    I2, O = w.shape
    assert I == I2

    gen = _tpu_generation()
    mxu_pref = 256 if gen >= 6 else 128  # v6e/v7x MXUs are 2x256^2; v5e is 4x128^2
    tm = _choose_tile(B, mxu_pref, 8)
    tn = _choose_tile(O, mxu_pref, 128)
    tk = _choose_tile(I, 512, 128)
    Bp, Ip, Op = _round_up(B, tm), _round_up(I, tk), _round_up(O, tn)

    xb = x.astype(jnp.bfloat16)
    wb = w.astype(jnp.bfloat16)
    if (Bp, Ip) != (B, I):
        xb = jnp.pad(xb, ((0, Bp - B), (0, Ip - I)))
    if (Ip, Op) != (I, O):
        wb = jnp.pad(wb, ((0, Ip - I), (0, Op - O)))
    b2 = b.reshape(1, O).astype(jnp.float32)
    if Op != O:
        b2 = jnp.pad(b2, ((0, 0), (0, Op - O)))

    grid = (Bp // tm, Op // tn, Ip // tk)
    cost = pl.CostEstimate(
        flops=2 * Bp * Ip * Op,
        transcendentals=0,
        bytes_accessed=2 * (Bp * Ip + Ip * Op) + 4 * (Op + Bp * Op),
    )

    out = pl.pallas_call(
        _linear_kernel,
        out_shape=jax.ShapeDtypeStruct((Bp, Op), jnp.float32),
        grid_spec=pltpu.PrefetchScalarGridSpec(
            num_scalar_prefetch=0,
            grid=grid,
            in_specs=[
                pl.BlockSpec((tm, tk), lambda i, j, k: (i, k)),
                pl.BlockSpec((tk, tn), lambda i, j, k: (k, j)),
                pl.BlockSpec((1, tn), lambda i, j, k: (0, j)),
            ],
            out_specs=pl.BlockSpec((tm, tn), lambda i, j, k: (i, j)),
        ),
        compiler_params=pltpu.CompilerParams(
            dimension_semantics=("parallel", "parallel", "arbitrary"),
            vmem_limit_bytes=_vmem_budget_bytes(),
        ),
        cost_estimate=cost,
    )(xb, wb, b2)

    if (Bp, Op) != (B, O):
        out = out[:B, :O]
    return out


# ------------------------------ allreduce wrapper ----------------------------

def _allreduce_tile_rows(rows_needed, world_size, vmem_budget):
    streams = world_size + 1                  # W inputs + 1 output
    bytes_per_row = 128 * 4                   # f32 worst case per stream
    usable = int(vmem_budget * 0.8)           # headroom for compiler scratch
    budget_rows = usable // (streams * 2 * bytes_per_row)   # double-buffered
    budget_rows = max(8, (budget_rows // 8) * 8)
    # >= 2 grid steps whenever there's enough data, so the "parallel" rows axis
    # actually spans both TensorCores on v7x.
    half_rows = max(8, _round_up(pl.cdiv(rows_needed, 2), 8))
    return min(budget_rows, half_rows, 4096)


def pallas_allreduce_average(per_replica_tensor_lists, world_size):
    """Average `world_size` grad buckets with a tiled Pallas kernel.

    Each replica's bucket is coalesced into one contiguous (rows, 128) slab;
    the zero tail is folded into the (already required) concatenate so no extra
    full-buffer pad/astype copy is materialized.  The kernel reduces across the
    W separate inputs one (tile_rows, 128) block per grid step and scales by
    1/world_size.  Returns the padded flat averaged buffer (valid prefix =
    original numel).
    """
    assert len(per_replica_tensor_lists) == world_size
    tensors0 = per_replica_tensor_lists[0]
    numel = int(sum(int(t.size) for t in tensors0))
    dtype = tensors0[0].dtype

    rows_needed = max(pl.cdiv(numel, 128), 1)
    vmem_budget = _vmem_budget_bytes()
    tile_rows = _allreduce_tile_rows(rows_needed, world_size, vmem_budget)
    rows = _round_up(rows_needed, tile_rows)
    padded_numel = rows * 128
    pad = padded_numel - numel
    grid = (rows // tile_rows,)

    slabs = []
    for tensors in per_replica_tensor_lists:
        parts = [t.reshape(-1) for t in tensors]
        if pad:
            parts.append(jnp.zeros((pad,), dtype))
        flat = parts[0] if len(parts) == 1 else jnp.concatenate(parts)
        slabs.append(flat.reshape(rows, 128))   # contiguous -> free reshape

    block = pl.BlockSpec((tile_rows, 128), lambda i: (i, 0))
    elem_bytes = dtype.itemsize
    cost = pl.CostEstimate(
        flops=world_size * padded_numel,
        transcendentals=0,
        bytes_accessed=(world_size + 1) * padded_numel * elem_bytes,
    )

    out = pl.pallas_call(
        _make_allreduce_avg_kernel(world_size),
        out_shape=jax.ShapeDtypeStruct((rows, 128), dtype),
        grid_spec=pltpu.PrefetchScalarGridSpec(
            num_scalar_prefetch=0,
            grid=grid,
            in_specs=[block] * world_size,
            out_specs=pl.BlockSpec((tile_rows, 128), lambda i: (i, 0)),
        ),
        compiler_params=pltpu.CompilerParams(
            dimension_semantics=("parallel",),
            vmem_limit_bytes=vmem_budget,
        ),
        cost_estimate=cost,
    )(*slabs)
    return out.reshape(-1)   # padded-tail zeros are ignored by the unflatten


# -------------------- flatten / unflatten (JAX glue) ------------------------

def _flatten_dense_tensors(tensors):
    if len(tensors) == 1:
        return tensors[0].reshape(-1)
    return jnp.concatenate([t.reshape(-1) for t in tensors], axis=0)


def _unflatten_dense_tensors(flat, tensors):
    outputs = []
    offset = 0
    for t in tensors:
        numel = t.size
        outputs.append(flat[offset:offset + numel].reshape(t.shape))
        offset += numel
    return tuple(outputs)


# ----------------------- DistributedDataParallel ----------------------------

class DistributedDataParallel:
    """JAX/Pallas analogue of the Tacotron2 DistributedDataParallel wrapper.

    The wrapped "module" is a Linear(in_features, out_features) whose forward
    is a Pallas MXU kernel.  Gradient synchronization (the allreduce hook) is
    exposed as `allreduce_params`, which takes per-replica gradients and
    returns averaged gradients using a tiled Pallas reduction kernel.
    """

    def __init__(self, params, world_size):
        # TODO(synk): dist.broadcast(p, 0) at init is a cross-process
        # collective; in this single-process script it is an identity.
        self.params = dict(params)     # {"weight": (I, O), "bias": (O,)}
        self.world_size = world_size
        self.warn_on_half = True
        self.needs_reduction = False

    def forward(self, x):
        self.needs_reduction = True
        return pallas_linear(x, self.params["weight"], self.params["bias"])

    __call__ = forward

    def allreduce_params(self, per_replica_grads):
        """per_replica_grads: list (len == world_size) of dicts matching params.

        Mirrors: coalesced = flatten(grads); dist.all_reduce(coalesced);
                 coalesced /= world_size; copy back via unflatten.
        """
        if not self.needs_reduction:
            return per_replica_grads[0]
        self.needs_reduction = False

        names = list(self.params.keys())
        per_replica_lists = [[g[n] for n in names] for g in per_replica_grads]
        coalesced = pallas_allreduce_average(per_replica_lists, self.world_size)
        synced = _unflatten_dense_tensors(
            coalesced, [self.params[n] for n in names]
        )
        return dict(zip(names, synced))


# --------------------------------- main --------------------------------------

if __name__ == "__main__":
    key = jax.random.PRNGKey(0)
    k_w, k_b, k_x, k_g = jax.random.split(key, 4)

    batch, in_features, out_features = 8, 32, 64
    world_size = 4

    # Deterministic "module" parameters (Linear layer).
    weight = jax.random.normal(k_w, (in_features, out_features), jnp.float32) * 0.1
    bias = jax.random.normal(k_b, (out_features,), jnp.float32) * 0.1

    ddp = DistributedDataParallel(
        {"weight": weight, "bias": bias}, world_size=world_size
    )

    # ---- forward pass (delegates to wrapped module's Pallas kernel) ----
    x = jax.random.normal(k_x, (batch, in_features), jnp.float32)
    y = ddp(x)
    y = jax.block_until_ready(y)

    # The MXU path uses bf16 inputs with an f32 accumulator; compare against a
    # same-precision XLA reference (tight) and the full-f32 one (coarse).
    y_ref_bf16 = jnp.dot(
        x.astype(jnp.bfloat16), weight.astype(jnp.bfloat16),
        preferred_element_type=jnp.float32,
    ) + bias
    y_ref_f32 = x @ weight + bias
    assert jnp.allclose(y, y_ref_bf16, atol=1e-4, rtol=1e-4), "forward mismatch (bf16 ref)"
    assert jnp.allclose(y, y_ref_f32, atol=5e-2, rtol=5e-2), "forward mismatch (f32 ref)"
    assert ddp.needs_reduction, "forward must set needs_reduction = True"

    # ---- gradient sync path (allreduce hook), emulated world of replicas ----
    gk = jax.random.split(k_g, world_size)
    per_replica_grads = [
        {
            "weight": jax.random.normal(gk[r], (in_features, out_features), jnp.float32),
            "bias": jax.random.normal(jax.random.fold_in(gk[r], 1), (out_features,), jnp.float32),
        }
        for r in range(world_size)
    ]
    synced = ddp.allreduce_params(per_replica_grads)
    synced = jax.tree_util.tree_map(jax.block_until_ready, synced)

    ref_w = sum(g["weight"] for g in per_replica_grads) / world_size
    ref_b = sum(g["bias"] for g in per_replica_grads) / world_size
    assert jnp.allclose(synced["weight"], ref_w, atol=1e-5, rtol=1e-5)
    assert jnp.allclose(synced["bias"], ref_b, atol=1e-5, rtol=1e-5)
    assert not ddp.needs_reduction, "allreduce must clear needs_reduction"

    print("KERNEL_OK")
</pallas_src>

<mosaic_0001>
module attributes {stable_mosaic.version = 11 : i64} {
  func.func @_linear_kernel(%arg0: i32, %arg1: i32, %arg2: i32, %arg3: memref<8x32xbf16, #tpu.memory_space<vmem>>, %arg4: memref<32x64xbf16, #tpu.memory_space<vmem>>, %arg5: memref<1x64xf32, #tpu.memory_space<vmem>>, %arg6: memref<8x64xf32, #tpu.memory_space<vmem>>) attributes {dimension_semantics = [#tpu.dimension_semantics<parallel>, #tpu.dimension_semantics<parallel>, #tpu.dimension_semantics<arbitrary>], iteration_bounds = array<i64: 1, 1, 1>, scalar_prefetch = 0 : i64, scratch_operands = 0 : i64, tpu.core_type = #tpu.core_type<tc>, window_params = [{transform_indices = @transform_0, window_bounds = array<i64: 8, 32>}, {transform_indices = @transform_1, window_bounds = array<i64: 32, 64>}, {transform_indices = @transform_2, window_bounds = array<i64: 1, 64>}, {transform_indices = @transform_3, window_bounds = array<i64: 8, 64>}]} {
    %c0_i32 = arith.constant 0 : i32
    %0 = arith.cmpi eq, %arg2, %c0_i32 : i32
    %1 = arith.extui %0 : i1 to i32
    %c0_i32_0 = arith.constant 0 : i32
    %2 = arith.cmpi ne, %1, %c0_i32_0 : i32
    scf.if %2 {
      %cst_10 = arith.constant 0.000000e+00 : f32
      %12 = vector.broadcast %cst_10 : f32 to vector<8x64xf32>
      %c0_11 = arith.constant 0 : index
      %c0_12 = arith.constant 0 : index
      %13 = vector.load %arg6[%c0_11, %c0_12] : memref<8x64xf32, #tpu.memory_space<vmem>>, vector<8x64xf32>
      tpu.vector_store %arg6[%c0_11, %c0_12], %12 {strides = array<i32>} : memref<8x64xf32, #tpu.memory_space<vmem>>, vector<8x64xf32>,
    } else {
    }
    %c0 = arith.constant 0 : index
    %c0_1 = arith.constant 0 : index
    %3 = vector.load %arg6[%c0, %c0_1] : memref<8x64xf32, #tpu.memory_space<vmem>>, vector<8x64xf32>
    %c0_2 = arith.constant 0 : index
    %c0_3 = arith.constant 0 : index
    %4 = vector.load %arg3[%c0_2, %c0_3] : memref<8x32xbf16, #tpu.memory_space<vmem>>, vector<8x32xbf16>
    %c0_4 = arith.constant 0 : index
    %c0_5 = arith.constant 0 : index
    %5 = vector.load %arg4[%c0_4, %c0_5] : memref<32x64xbf16, #tpu.memory_space<vmem>>, vector<32x64xbf16>
    %cst = arith.constant dense<0.000000e+00> : vector<8x64xf32>
    %6 = tpu.matmul %4, %5, %cst {dimension_numbers = #tpu.dot_dimension_numbers<[1], [0], [0], [1], [0, 0, 1, 1], [], []>} : vector<8x32xbf16>, vector<32x64xbf16>, vector<8x64xf32> -> vector<8x64xf32>
    %7 = arith.addf %3, %6 : vector<8x64xf32>
    %c0_6 = arith.constant 0 : index
    %c0_7 = arith.constant 0 : index
    %8 = vector.load %arg6[%c0_6, %c0_7] : memref<8x64xf32, #tpu.memory_space<vmem>>, vector<8x64xf32>
    tpu.vector_store %arg6[%c0_6, %c0_7], %7 {strides = array<i32>} : memref<8x64xf32, #tpu.memory_space<vmem>>, vector<8x64xf32>,
    %c0_i32_8 = arith.constant 0 : i32
    %9 = arith.cmpi eq, %arg2, %c0_i32_8 : i32
    %10 = arith.extui %9 : i1 to i32
    %c0_i32_9 = arith.constant 0 : i32
    %11 = arith.cmpi ne, %10, %c0_i32_9 : i32
    scf.if %11 {
      %c0_10 = arith.constant 0 : index
      %c0_11 = arith.constant 0 : index
      %12 = vector.load %arg6[%c0_10, %c0_11] : memref<8x64xf32, #tpu.memory_space<vmem>>, vector<8x64xf32>
      %c0_12 = arith.constant 0 : index
      %c0_13 = arith.constant 0 : index
      %13 = vector.load %arg5[%c0_12, %c0_13] : memref<1x64xf32, #tpu.memory_space<vmem>>, vector<1x64xf32>
      %14 = vector.broadcast %13 : vector<1x64xf32> to vector<8x64xf32>
      %15 = arith.addf %12, %14 : vector<8x64xf32>
      %c0_14 = arith.constant 0 : index
      %c0_15 = arith.constant 0 : index
      %16 = vector.load %arg6[%c0_14, %c0_15] : memref<8x64xf32, #tpu.memory_space<vmem>>, vector<8x64xf32>
      tpu.vector_store %arg6[%c0_14, %c0_15], %15 {strides = array<i32>} : memref<8x64xf32, #tpu.memory_space<vmem>>, vector<8x64xf32>,
    } else {
    }
    return
  }
  func.func @transform_0(%arg0: i32, %arg1: i32, %arg2: i32) -> (i32, i32) {
    %c0_i32 = arith.constant 0 : i32
    return %arg0, %arg2 : i32, i32
  }
  func.func @transform_1(%arg0: i32, %arg1: i32, %arg2: i32) -> (i32, i32) {
    %c0_i32 = arith.constant 0 : i32
    return %arg2, %arg1 : i32, i32
  }
  func.func @transform_2(%arg0: i32, %arg1: i32, %arg2: i32) -> (i32, i32) {
    %c0_i32 = arith.constant 0 : i32
    %c0_i32_0 = arith.constant 0 : i32
    return %c0_i32, %arg1 : i32, i32
  }
  func.func @transform_3(%arg0: i32, %arg1: i32, %arg2: i32) -> (i32, i32) {
    %c0_i32 = arith.constant 0 : i32
    return %arg0, %arg1 : i32, i32
  }
}

</mosaic_0001>

<llo_original>
// kernel: tpu_custom_call.1
$region0: #{tpu_custom_call.1}
  #allocation0 [shape = 'u32[]', space=smem, size = 0x4, offset = 0x4, fixed_abs, tag = 'smem constant byte address 0x4 - core index']
  #allocation1 [shape = 'u32[72,128]{1,0:T(1,128)}', space=vmem, size = 0x9000, scoped, tag = 'internal scratch']
  %s0 = inlined_call_operand.hbm [shape: bf16[8,32], index: 0, kind: input, shape index: {}]
  %s1 = inlined_call_operand.hbm [shape: bf16[32,64], index: 1, kind: input, shape index: {}]
  %s2 = inlined_call_operand.vmem [shape: f32[1,64], index: 2, kind: input, shape index: {}]
  %s3 = inlined_call_operand.hbm [shape: f32[8,64], index: 3, kind: output, shape index: {}]
  %s4 = sld [smem:[#allocation0]]
  $region38: #{tpu_custom_call.1} parent=0
    _
  %s6 = ssub.s32 1, %s4
  %s7 = scalar_select 0, %s6, %s4
  $region1: #{tpu_custom_call.1} parent=0
    #allocation2 [shape = 'u8[2048]{0}', space=vmem, size = 0x800, scoped, tag = 'input window, operand 0, single buffered']
    #allocation3 [shape = 's32[1]{0}', space=sflag, size = 0x4, scoped, tag = 'scoped memory for tpu_custom_call.1']
    #allocation4 [shape = 's32[1]{0}', space=sflag, size = 0x4, scoped, tag = 'scoped memory for tpu_custom_call.1']
    #allocation5 [shape = 'u8[8192]{0}', space=vmem, size = 0x2000, scoped, tag = 'input window, operand 1, single buffered']
    #allocation6 [shape = 's32[1]{0}', space=sflag, size = 0x4, scoped, tag = 'scoped memory for tpu_custom_call.1']
    #allocation7 [shape = 'u8[4096]{0}', space=vmem, size = 0x1000, scoped, tag = 'output window, operand 0, single buffered']
    %8 = vsyncpa [#allocation3], 0
    %9 = vsyncpa [#allocation6], 0
    %10 = vsyncpa [#allocation4], 0
    // Predicated region
    $region2: #{tpu_custom_call.1} parent=1 // pred_check
      _
    $region3: #{tpu_custom_call.1} parent=1 // pred_check_branch
      %12 = sbr.rel (0) target = $region5
    $region4: #{tpu_custom_call.1} parent=1 // pred_region
      %14 = vsyncadd [#allocation3], 0
      %s16 = sshll.u32 %s0, 4
      %s17 = int_to_ptr.hbm [resolvable:$true] %s16
      %s18 = sshll.u32 [#allocation2], 4
      %s19 = int_to_ptr.vmem [resolvable:$true] %s18
      %21 = dma.hbm_to_vmem [thread:$0]  %s17, 64, %s19, [#allocation3]
    $region5: #{tpu_custom_call.1} parent=1 // pred_fallthru
      _
    // Predicated region
    $region6: #{tpu_custom_call.1} parent=1 // pred_check
      _
    $region7: #{tpu_custom_call.1} parent=1 // pred_check_branch
      %23 = sbr.rel (0) target = $region9
    $region8: #{tpu_custom_call.1} parent=1 // pred_region
      %25 = vsyncadd [#allocation6], 0
      %s26 = sshll.u32 %s1, 4
      %s27 = int_to_ptr.hbm [resolvable:$true] %s26
      %s28 = sshll.u32 [#allocation5], 4
      %s29 = int_to_ptr.vmem [resolvable:$true] %s28
      %34 = dma.hbm_to_vmem [thread:$0]  %s27, 256, %s29, [#allocation6], 64, 64, 4
    $region9: #{tpu_custom_call.1} parent=1 // pred_fallthru
      _
    // Predicated region
    $region10: #{tpu_custom_call.1} parent=1 // pred_check
      _
    $region11: #{tpu_custom_call.1} parent=1 // pred_check_branch
      %36 = sbr.rel (0) target = $region13
    $region12: #{tpu_custom_call.1} parent=1 // pred_region
      _
    $region13: #{tpu_custom_call.1} parent=1 // pred_fallthru
      _
    // Predicated region
    $region14: #{tpu_custom_call.1} parent=1 // pred_check
      _
    $region15: #{tpu_custom_call.1} parent=1 // pred_check_branch
      %38 = sbr.rel (0) target = $region17
    $region16: #{tpu_custom_call.1} parent=1 // pred_region
      %40 = dma.done [#allocation3], 64
    $region17: #{tpu_custom_call.1} parent=1 // pred_fallthru
      _
    // Predicated region
    $region18: #{tpu_custom_call.1} parent=1 // pred_check
      _
    $region19: #{tpu_custom_call.1} parent=1 // pred_check_branch
      %42 = sbr.rel (0) target = $region21
    $region20: #{tpu_custom_call.1} parent=1 // pred_region
      %44 = dma.done [#allocation6], 256
    $region21: #{tpu_custom_call.1} parent=1 // pred_fallthru
      _
    %p46 = scmp.eq.s32.totalorder 0, 0
    // Predicated region
    $region22: #{tpu_custom_call.1} parent=1 // pred_check
      %p47 = pneg %p46
    $region23: #{tpu_custom_call.1} parent=1 // pred_check_branch
      %49 = sbr.rel (%p47) target = $region25
    $region24: #{tpu_custom_call.1} parent=1 // pred_region
      %vm50 = vcmask 523264
      %51 = vst.msk [vmem:[#allocation7] sm:$0xff] %vm50, 0.0
    $region25: #{tpu_custom_call.1} parent=1 // pred_fallthru
      _
    %v52 = vld [vmem:[#allocation7] sm:$0xff]
    %v53 = vld [vmem:[#allocation2] sm:$0xf]
    %v54 = vld [vmem:[#allocation5] sm:$0xf]
    %v55 = vld [vmem:[#allocation5 + $0x4] sm:$0xf]
    %v56 = vld [vmem:[#allocation5 + $0x8] sm:$0xf]
    %v57 = vld [vmem:[#allocation5 + $0xc] sm:$0xf]
    %v62 = vunpack.c.l.b16 %v54
    %v63 = vunpack.c.l.b16 %v55
    %v64 = vunpack.c.l.b16 %v56
    %v65 = vunpack.c.l.b16 %v57
    %v66 = vpack.c.b16 %v63, %v62
    %v67 = vpack.c.b16 %v65, %v64
    %vm70 = vcmask 261120
    %v72 = vsel %vm70, %v53, 0
    %74 = vmatpush.bf16.msra.mxu0 0
    %75 = vmatpush.bf16.msra.mxu0 0
    %76 = vmatpush.bf16.msra.mxu0 0
    %77 = vmatpush.bf16.msra.mxu0 0
    %78 = vmatpush.bf16.msra.mxu0 0
    %79 = vmatpush.bf16.msra.mxu0 0
    %80 = vmatpush.bf16.msra.mxu0 %v67
    %81 = vmatpush.bf16.msra.mxu0 %v66
    %82 = vmatmul.bf16.gmra.mxu0 %v72
    %v83 = vpop.f32.mrf.mxu0
    %v84 = vadd.f32 0.0, %v83
    %v85 = vpop.f32.mrf.mxu0
    %86 = vdwg.mxu0
    %v87 = vadd.f32 %v52, %v84
    %vm88 = vcmask 523264
    %89 = vst.msk [vmem:[#allocation7] sm:$0xff] %vm88, %v87
    // Predicated region
    $region26: #{tpu_custom_call.1} parent=1 // pred_check
      %p90 = pneg %p46
    $region27: #{tpu_custom_call.1} parent=1 // pred_check_branch
      %92 = sbr.rel (%p90) target = $region29
    $region28: #{tpu_custom_call.1} parent=1 // pred_region
      %v93 = vld [vmem:[#allocation7] sm:$0xff]
      %v94 = vld [vmem:[%s2] sm:$0x1]
      %v96 = vperm.slane %v94, 0
      %v98 = vadd.f32 %v93, %v96
      %99 = vst.msk [vmem:[#allocation7] sm:$0xff] %vm88, %v98
    $region29: #{tpu_custom_call.1} parent=1 // pred_fallthru
      _
    // Predicated region
    $region30: #{tpu_custom_call.1} parent=1 // pred_check
      _
    $region31: #{tpu_custom_call.1} parent=1 // pred_check_branch
      %101 = sbr.rel (0) target = $region33
    $region32: #{tpu_custom_call.1} parent=1 // pred_region
      %103 = vsyncadd [#allocation4], 0
      %s105 = sshll.u32 [#allocation7], 4
      %s106 = int_to_ptr.vmem [resolvable:$true] %s105
      %s107 = sshll.u32 %s3, 4
      %s108 = int_to_ptr.hbm [resolvable:$true] %s107
      %110 = dma.vmem_to_hbm [thread:$0]  %s106, 128, %s108, [#allocation4]
    $region33: #{tpu_custom_call.1} parent=1 // pred_fallthru
      _
    // Predicated region
    $region34: #{tpu_custom_call.1} parent=1 // pred_check
      _
    $region35: #{tpu_custom_call.1} parent=1 // pred_check_branch
      %112 = sbr.rel (0) target = $region37
    $region36: #{tpu_custom_call.1} parent=1 // pred_region
      %114 = dma.done [#allocation4], 128
    $region37: #{tpu_custom_call.1} parent=1 // pred_fallthru
      _
    %115 = vsyncpa [#allocation3], 1
    %116 = vsyncpa [#allocation6], 1
    %117 = vsyncpa [#allocation4], 1

</llo_original>
